<compile_context>
chip_gen: v5e
topology: v5e:2x2
jax: 0.10.0
libtpu: 0.0.40
codegen_flags: <defaults>
</compile_context>

<pallas_src>
import functools

import numpy as np
import jax
import jax.numpy as jnp
from jax import lax
from jax.experimental import pallas as pl
from jax.experimental.pallas import tpu as pltpu


# --------------------------------------------------------------------------- #
# Helpers                                                                      #
# --------------------------------------------------------------------------- #
def _round_up(x, m):
    return (x + m - 1) // m * m


def _padded_vmem_bytes(shape, dtype):
    """Physical VMEM footprint: second-to-last dim padded to 8 sublanes, last
    dim padded to 128 lanes (review item: budget from padded, not logical)."""
    itemsize = np.dtype(dtype).itemsize
    if len(shape) == 0:
        return itemsize
    if len(shape) == 1:
        return _round_up(shape[0] * itemsize, 512)
    lead = int(np.prod(shape[:-2])) if len(shape) > 2 else 1
    return lead * _round_up(shape[-2], 8) * _round_up(shape[-1], 128) * itemsize


def _build_banded_weight(w_kkio, W):
    """(KH, KW, Cin, Cout) -> (KH, W*Cin, W*Cout) banded matrices.

    band[kh, wi*Cin+ci, wo*Cout+co] = w[kh, wi-wo+pw, ci, co] inside the band,
    0 outside, so 'same' zero padding along W is encoded by the zero entries
    (exact zeros cost nothing numerically) and the conv along W becomes a
    single lane-dense matmul per kh tap.
    """
    KH, KW, Cin, Cout = w_kkio.shape
    pw = KW // 2
    band = jnp.zeros((KH, W * Cin, W * Cout), w_kkio.dtype)
    for kw in range(KW):
        for wo in range(W):
            wi = wo + kw - pw
            if 0 <= wi < W:
                band = band.at[:, wi * Cin:(wi + 1) * Cin,
                               wo * Cout:(wo + 1) * Cout].set(w_kkio[:, kw])
    return band


# --------------------------------------------------------------------------- #
# Fused kernel: conv chain ('same', stride 1) + bias + ReLU + optional maxpool #
# --------------------------------------------------------------------------- #
def _fused_conv_layer_kernel(*refs, H, W, KH, chans, pool_s, matmul_dtype):
    """refs = (x, band0, bias0, band1, bias1, ..., o, xpad0, xpad1, ...)."""
    n_convs = len(chans) - 1
    ph = KH // 2
    f32 = jnp.float32

    x_ref = refs[0]
    conv_refs = refs[1:1 + 2 * n_convs]
    o_ref = refs[1 + 2 * n_convs]
    xpads = refs[2 + 2 * n_convs:]
    NB = x_ref.shape[0]

    a = x_ref[...]                                   # (NB, H, W*Cin), lane-dense
    for j in range(n_convs):
        band_ref = conv_refs[2 * j]                  # (KH, W*cin, W*cout)
        bias_ref = conv_refs[2 * j + 1]              # (1, W*cout)
        xpad = xpads[j]                              # (NB, H+2ph, W*cin) f32
        kcin = W * chans[j]
        kcout = W * chans[j + 1]
        last = (j == n_convs - 1)

        # 'same' H-padding in VMEM: zero only the halo rows (interior is fully
        # rewritten every step), then one lane-dense interior store.
        if ph > 0:
            xpad[:, 0:ph, :] = jnp.zeros((NB, ph, kcin), f32)
            xpad[:, ph + H:ph + H + ph, :] = jnp.zeros((NB, ph, kcin), f32)
        xpad[:, ph:ph + H, :] = a

        def tap_matmul(row_start, n_rows, row_stride,
                       xpad=xpad, band_ref=band_ref, kcin=kcin, kcout=kcout):
            # One banded MXU matmul per kh tap; shifted rows are plain
            # address-offset reads from the VMEM ref (no XLU, no masked vst).
            acc = jnp.zeros((NB * n_rows, kcout), f32)
            for kh in range(KH):
                if row_stride == 1:
                    lhs = xpad[:, row_start + kh:row_start + kh + n_rows, :]
                else:
                    lhs = xpad[:, pl.ds(row_start + kh, n_rows,
                                        stride=row_stride), :]
                lhs = lhs.reshape(NB * n_rows, kcin).astype(matmul_dtype)
                acc = acc + jnp.dot(lhs, band_ref[kh],
                                    preferred_element_type=f32)
            return acc

        if last and pool_s > 1:
            Ho, Wo = H // pool_s, W // pool_s
            cl = chans[-1]
            # H direction of the max-pool fused into the tap reads: conv rows
            # pool_s*ho + dh are produced per dh and maxed (no full-H
            # activation is materialised for the last conv).
            hmax = tap_matmul(0, Ho, pool_s)
            for dh in range(1, pool_s):
                hmax = jnp.maximum(hmax, tap_matmul(dh, Ho, pool_s))
            hmax = hmax + bias_ref[...]              # bias commutes with max
            # W direction: lane-block max + static lane-slice compaction; the
            # result is a lane-dense (Wo*cl) row.
            cols = []
            for wo in range(Wo):
                base = wo * pool_s * cl
                blk = hmax[:, base:base + cl]
                for dw in range(1, pool_s):
                    blk = jnp.maximum(
                        blk, hmax[:, base + dw * cl:base + (dw + 1) * cl])
                cols.append(blk)
            pooled = jnp.concatenate(cols, axis=-1)  # (NB*Ho, Wo*cl)
            o_ref[...] = pooled.reshape(NB, Ho, Wo * cl).astype(o_ref.dtype)
        else:
            acc = tap_matmul(0, H, 1) + bias_ref[...]
            if not last:                             # ReLU between convs only
                a = jnp.maximum(acc, 0.0).reshape(NB, H, kcout)
            else:
                o_ref[...] = acc.reshape(NB, H, kcout).astype(o_ref.dtype)


def fused_conv_layer(x_nhwc, params, pool_s, *, matmul_dtype=jnp.float32,
                     batch_block=None):
    """x_nhwc: (N,H,W,Cin); params: [(w_kkio, b), ...]; pool_s: 1 = no pool."""
    assert len(params) >= 1
    N, H, W, Cin = x_nhwc.shape
    KH, KW, _, _ = params[0][0].shape
    assert KH % 2 == 1 and KW % 2 == 1, "padding='same' kernel assumed odd-sized"
    ph = KH // 2
    chans = [Cin] + [w.shape[-1] for (w, _) in params]
    n_convs = len(params)
    Clast = chans[-1]
    if pool_s > 1:
        assert H % pool_s == 0 and W % pool_s == 0
        Ho, Wo = H // pool_s, W // pool_s
    else:
        Ho, Wo = H, W

    NB = N if batch_block is None else batch_block
    assert N % NB == 0
    nblocks = N // NB

    # Banded weights + W-tiled biases (lane index = w*Cout + co).
    flat_ops = []
    for (w_kkio, b) in params:
        cout = w_kkio.shape[-1]
        flat_ops.append(_build_banded_weight(w_kkio, W).astype(matmul_dtype))
        flat_ops.append(jnp.tile(b, W).reshape(1, W * cout).astype(jnp.float32))

    x_flat = x_nhwc.reshape(N, H, W * Cin)           # free: merges contiguous dims

    in_specs = [pl.BlockSpec((NB, H, W * Cin), lambda nb: (nb, 0, 0))]
    block_defs = [((NB, H, W * Cin), x_flat.dtype)]
    for j in range(n_convs):
        kcin, kcout = W * chans[j], W * chans[j + 1]
        in_specs.append(pl.BlockSpec((KH, kcin, kcout), lambda nb: (0, 0, 0)))
        in_specs.append(pl.BlockSpec((1, kcout), lambda nb: (0, 0)))
        block_defs.append(((KH, kcin, kcout), matmul_dtype))
        block_defs.append(((1, kcout), jnp.float32))
    out_block = (NB, Ho, Wo * Clast)
    block_defs.append((out_block, x_nhwc.dtype))

    scratch_defs = [((NB, H + 2 * ph, W * chans[j]), jnp.float32)
                    for j in range(n_convs)]
    scratch_shapes = [pltpu.VMEM(s, d) for s, d in scratch_defs]

    # VMEM budget from lane/sublane-padded sizes (+2x double buffering, 2x headroom).
    vmem_bytes = (sum(_padded_vmem_bytes(s, d) for s, d in scratch_defs)
                  + 2 * sum(_padded_vmem_bytes(s, d) for s, d in block_defs))
    vmem_limit = int(min(max(2 * vmem_bytes, 4 * 1024 * 1024), 48 * 1024 * 1024))

    flops = 2 * N * H * KH * sum(W * chans[j] * W * chans[j + 1]
                                 for j in range(n_convs))
    bytes_accessed = (int(x_flat.size) * x_flat.dtype.itemsize
                      + sum(int(op.size) * op.dtype.itemsize for op in flat_ops)
                      + N * Ho * Wo * Clast * x_nhwc.dtype.itemsize)

    kernel = functools.partial(_fused_conv_layer_kernel, H=H, W=W, KH=KH,
                               chans=tuple(chans), pool_s=pool_s,
                               matmul_dtype=matmul_dtype)
    y = pl.pallas_call(
        kernel,
        out_shape=jax.ShapeDtypeStruct((N, Ho, Wo * Clast), x_nhwc.dtype),
        grid_spec=pltpu.PrefetchScalarGridSpec(
            num_scalar_prefetch=0,
            grid=(nblocks,),
            in_specs=in_specs,
            out_specs=pl.BlockSpec(out_block, lambda nb: (nb, 0, 0)),
            scratch_shapes=scratch_shapes,
        ),
        compiler_params=pltpu.CompilerParams(
            dimension_semantics=("parallel",),
            vmem_limit_bytes=vmem_limit,
        ),
        cost_estimate=pl.CostEstimate(flops=flops, transcendentals=0,
                                      bytes_accessed=bytes_accessed),
    )(x_flat, *flat_ops)
    return y.reshape(N, Ho, Wo, Clast)


# ------------------------------------------------------------------ #
# ConvLayer forward (NCHW in / NCHW out, matching the PyTorch module) #
# ------------------------------------------------------------------ #
def conv_layer_forward(x_nchw, params, scale, *, matmul_dtype=jnp.float32,
                       batch_block=None):
    x = jnp.transpose(x_nchw, (0, 2, 3, 1))          # NCHW -> NHWC
    pool_s = round(1.0 / scale) if scale < 1 else 1
    y = fused_conv_layer(x, params, pool_s, matmul_dtype=matmul_dtype,
                         batch_block=batch_block)
    if scale > 1:
        s = round(scale)
        N, H, W, C = y.shape
        # nearest-neighbour upsample as ONE broadcast+reshape pass
        y = jnp.broadcast_to(y[:, :, None, :, None, :],
                             (N, H, s, W, s, C)).reshape(N, H * s, W * s, C)
    return jnp.transpose(y, (0, 3, 1, 2))             # NHWC -> NCHW


# ------------------------- #
# Pure-JAX reference (XLA)  #
# ------------------------- #
def reference_forward(x_nchw, params, scale):
    y = x_nchw
    n_convs = len(params)
    for j, (w_kkio, b) in enumerate(params):
        w_oihw = jnp.transpose(w_kkio, (3, 2, 0, 1))
        y = lax.conv_general_dilated(
            y, w_oihw, window_strides=(1, 1), padding="SAME",
            dimension_numbers=("NCHW", "OIHW", "NCHW")) + b[None, :, None, None]
        if j + 1 < n_convs:
            y = jnp.maximum(y, 0.0)
    if scale != 1:
        if scale > 1:
            s = round(scale)
            y = jnp.repeat(jnp.repeat(y, s, axis=2), s, axis=3)
        else:
            s = round(1.0 / scale)
            y = lax.reduce_window(y, -jnp.inf, lax.max,
                                  (1, 1, s, s), (1, 1, s, s), "VALID")
    return y


def init_params(key, n_channels, kernel_size):
    """Deterministic init mimicking PyTorch Conv2d default (uniform +-1/sqrt(fan_in))."""
    params = []
    for in_dim, out_dim in zip(n_channels[:-1], n_channels[1:]):
        key, kw, kb = jax.random.split(key, 3)
        fan_in = in_dim * kernel_size * kernel_size
        bound = 1.0 / np.sqrt(fan_in)
        w_oihw = jax.random.uniform(kw, (out_dim, in_dim, kernel_size, kernel_size),
                                    jnp.float32, -bound, bound)
        b = jax.random.uniform(kb, (out_dim,), jnp.float32, -bound, bound)
        w_kkio = jnp.transpose(w_oihw, (2, 3, 1, 0))   # (KH, KW, Cin, Cout)
        params.append((w_kkio, b))
    return params


if __name__ == "__main__":
    key = jax.random.PRNGKey(0)
    n_channels = [4, 8, 8]
    kernel_size = 3

    kx, kp = jax.random.split(key)
    x = jax.random.normal(kx, (2, 4, 16, 16), jnp.float32)   # NCHW, like PyTorch
    params = init_params(kp, n_channels, kernel_size)

    # scale < 1 -> MaxPool2d(2) branch (pool fused into the last conv), f32 matmuls
    out_pool = conv_layer_forward(x, params, scale=0.5)
    jax.block_until_ready(out_pool)
    ref_pool = reference_forward(x, params, scale=0.5)
    np.testing.assert_allclose(np.asarray(out_pool), np.asarray(ref_pool),
                               rtol=1e-4, atol=1e-4)
    assert out_pool.shape == (2, 8, 8, 8)

    # scale > 1 -> UpsamplingNearest2d(2) branch (single XLA replication pass)
    out_up = conv_layer_forward(x, params, scale=2.0)
    jax.block_until_ready(out_up)
    ref_up = reference_forward(x, params, scale=2.0)
    np.testing.assert_allclose(np.asarray(out_up), np.asarray(ref_up),
                               rtol=1e-4, atol=1e-4)
    assert out_up.shape == (2, 8, 32, 32)

    # bf16 matmul operands + f32 accumulation (v6e/v7x optimization), looser tol
    out_bf16 = conv_layer_forward(x, params, scale=0.5,
                                  matmul_dtype=jnp.bfloat16)
    jax.block_until_ready(out_bf16)
    np.testing.assert_allclose(np.asarray(out_bf16), np.asarray(ref_pool),
                               rtol=2e-2, atol=2e-2)

    print("KERNEL_OK")
</pallas_src>

<mosaic_0001>
module attributes {stable_mosaic.version = 11 : i64} {
  func.func @_fused_conv_layer_kernel(%arg0: i32, %arg1: memref<2x16x64xf32, #tpu.memory_space<vmem>>, %arg2: memref<3x64x128xf32, #tpu.memory_space<vmem>>, %arg3: memref<1x128xf32, #tpu.memory_space<vmem>>, %arg4: memref<3x128x128xf32, #tpu.memory_space<vmem>>, %arg5: memref<1x128xf32, #tpu.memory_space<vmem>>, %arg6: memref<2x8x64xf32, #tpu.memory_space<vmem>>, %arg7: memref<2x18x64xf32, #tpu.memory_space<vmem>>, %arg8: memref<2x18x128xf32, #tpu.memory_space<vmem>>) attributes {dimension_semantics = [#tpu.dimension_semantics<parallel>], iteration_bounds = array<i64: 1>, scalar_prefetch = 0 : i64, scratch_operands = 2 : i64, tpu.core_type = #tpu.core_type<tc>, window_params = [{transform_indices = @transform_0, window_bounds = array<i64: 2, 16, 64>}, {pipeline_mode = #tpu.pipeline_mode<synchronous>, transform_indices = @transform_1, window_bounds = array<i64: 3, 64, 128>}, {pipeline_mode = #tpu.pipeline_mode<synchronous>, transform_indices = @transform_2, window_bounds = array<i64: 1, 128>}, {pipeline_mode = #tpu.pipeline_mode<synchronous>, transform_indices = @transform_3, window_bounds = array<i64: 3, 128, 128>}, {pipeline_mode = #tpu.pipeline_mode<synchronous>, transform_indices = @transform_4, window_bounds = array<i64: 1, 128>}, {transform_indices = @transform_5, window_bounds = array<i64: 2, 8, 64>}]} {
    %c0 = arith.constant 0 : index
    %c0_0 = arith.constant 0 : index
    %c0_1 = arith.constant 0 : index
    %0 = vector.load %arg1[%c0, %c0_0, %c0_1] : memref<2x16x64xf32, #tpu.memory_space<vmem>>, vector<2x16x64xf32>
    %cst = arith.constant 0.000000e+00 : f32
    %1 = vector.broadcast %cst : f32 to vector<2x1x64xf32>
    %c0_2 = arith.constant 0 : index
    %c0_3 = arith.constant 0 : index
    %c0_4 = arith.constant 0 : index
    %2 = vector.load %arg7[%c0_2, %c0_3, %c0_4] : memref<2x18x64xf32, #tpu.memory_space<vmem>>, vector<2x1x64xf32>
    tpu.vector_store %arg7[%c0_2, %c0_3, %c0_4], %1 {strides = array<i32>} : memref<2x18x64xf32, #tpu.memory_space<vmem>>, vector<2x1x64xf32>,
    %cst_5 = arith.constant 0.000000e+00 : f32
    %3 = vector.broadcast %cst_5 : f32 to vector<2x1x64xf32>
    %c0_6 = arith.constant 0 : index
    %c17 = arith.constant 17 : index
    %c0_7 = arith.constant 0 : index
    %4 = vector.load %arg7[%c0_6, %c17, %c0_7] : memref<2x18x64xf32, #tpu.memory_space<vmem>>, vector<2x1x64xf32>
    tpu.vector_store %arg7[%c0_6, %c17, %c0_7], %3 {strides = array<i32>} : memref<2x18x64xf32, #tpu.memory_space<vmem>>, vector<2x1x64xf32>,
    %c0_8 = arith.constant 0 : index
    %c1 = arith.constant 1 : index
    %c0_9 = arith.constant 0 : index
    %5 = vector.load %arg7[%c0_8, %c1, %c0_9] : memref<2x18x64xf32, #tpu.memory_space<vmem>>, vector<2x16x64xf32>
    tpu.vector_store %arg7[%c0_8, %c1, %c0_9], %0 {strides = array<i32>} : memref<2x18x64xf32, #tpu.memory_space<vmem>>, vector<2x16x64xf32>,
    %cst_10 = arith.constant 0.000000e+00 : f32
    %6 = vector.broadcast %cst_10 : f32 to vector<32x128xf32>
    %c0_11 = arith.constant 0 : index
    %c0_12 = arith.constant 0 : index
    %c0_13 = arith.constant 0 : index
    %7 = vector.load %arg7[%c0_11, %c0_12, %c0_13] : memref<2x18x64xf32, #tpu.memory_space<vmem>>, vector<2x16x64xf32>
    %8 = vector.shape_cast %7 : vector<2x16x64xf32> to vector<32x64xf32>
    %c0_14 = arith.constant 0 : index
    %c0_15 = arith.constant 0 : index
    %c0_16 = arith.constant 0 : index
    %9 = vector.load %arg2[%c0_14, %c0_15, %c0_16] : memref<3x64x128xf32, #tpu.memory_space<vmem>>, vector<1x64x128xf32>
    %10 = vector.shape_cast %9 : vector<1x64x128xf32> to vector<64x128xf32>
    %cst_17 = arith.constant dense<0.000000e+00> : vector<32x128xf32>
    %11 = tpu.matmul %8, %10, %cst_17 {dimension_numbers = #tpu.dot_dimension_numbers<[1], [0], [0], [1], [0, 0, 1, 1], [], []>} : vector<32x64xf32>, vector<64x128xf32>, vector<32x128xf32> -> vector<32x128xf32>
    %12 = arith.addf %6, %11 : vector<32x128xf32>
    %c0_18 = arith.constant 0 : index
    %c1_19 = arith.constant 1 : index
    %c0_20 = arith.constant 0 : index
    %13 = vector.load %arg7[%c0_18, %c1_19, %c0_20] : memref<2x18x64xf32, #tpu.memory_space<vmem>>, vector<2x16x64xf32>
    %14 = vector.shape_cast %13 : vector<2x16x64xf32> to vector<32x64xf32>
    %c1_21 = arith.constant 1 : index
    %c0_22 = arith.constant 0 : index
    %c0_23 = arith.constant 0 : index
    %15 = vector.load %arg2[%c1_21, %c0_22, %c0_23] : memref<3x64x128xf32, #tpu.memory_space<vmem>>, vector<1x64x128xf32>
    %16 = vector.shape_cast %15 : vector<1x64x128xf32> to vector<64x128xf32>
    %cst_24 = arith.constant dense<0.000000e+00> : vector<32x128xf32>
    %17 = tpu.matmul %14, %16, %cst_24 {dimension_numbers = #tpu.dot_dimension_numbers<[1], [0], [0], [1], [0, 0, 1, 1], [], []>} : vector<32x64xf32>, vector<64x128xf32>, vector<32x128xf32> -> vector<32x128xf32>
    %18 = arith.addf %12, %17 : vector<32x128xf32>
    %c0_25 = arith.constant 0 : index
    %c2 = arith.constant 2 : index
    %c0_26 = arith.constant 0 : index
    %19 = vector.load %arg7[%c0_25, %c2, %c0_26] : memref<2x18x64xf32, #tpu.memory_space<vmem>>, vector<2x16x64xf32>
    %20 = vector.shape_cast %19 : vector<2x16x64xf32> to vector<32x64xf32>
    %c2_27 = arith.constant 2 : index
    %c0_28 = arith.constant 0 : index
    %c0_29 = arith.constant 0 : index
    %21 = vector.load %arg2[%c2_27, %c0_28, %c0_29] : memref<3x64x128xf32, #tpu.memory_space<vmem>>, vector<1x64x128xf32>
    %22 = vector.shape_cast %21 : vector<1x64x128xf32> to vector<64x128xf32>
    %cst_30 = arith.constant dense<0.000000e+00> : vector<32x128xf32>
    %23 = tpu.matmul %20, %22, %cst_30 {dimension_numbers = #tpu.dot_dimension_numbers<[1], [0], [0], [1], [0, 0, 1, 1], [], []>} : vector<32x64xf32>, vector<64x128xf32>, vector<32x128xf32> -> vector<32x128xf32>
    %24 = arith.addf %18, %23 : vector<32x128xf32>
    %c0_31 = arith.constant 0 : index
    %c0_32 = arith.constant 0 : index
    %25 = vector.load %arg3[%c0_31, %c0_32] : memref<1x128xf32, #tpu.memory_space<vmem>>, vector<1x128xf32>
    %26 = vector.broadcast %25 : vector<1x128xf32> to vector<32x128xf32>
    %27 = arith.addf %24, %26 : vector<32x128xf32>
    %cst_33 = arith.constant 0.000000e+00 : f32
    %28 = vector.broadcast %cst_33 : f32 to vector<32x128xf32>
    %29 = arith.maximumf %27, %28 : vector<32x128xf32>
    %30 = vector.shape_cast %29 : vector<32x128xf32> to vector<2x16x128xf32>
    %cst_34 = arith.constant 0.000000e+00 : f32
    %31 = vector.broadcast %cst_34 : f32 to vector<2x1x128xf32>
    %c0_35 = arith.constant 0 : index
    %c0_36 = arith.constant 0 : index
    %c0_37 = arith.constant 0 : index
    %32 = vector.load %arg8[%c0_35, %c0_36, %c0_37] : memref<2x18x128xf32, #tpu.memory_space<vmem>>, vector<2x1x128xf32>
    tpu.vector_store %arg8[%c0_35, %c0_36, %c0_37], %31 {strides = array<i32>} : memref<2x18x128xf32, #tpu.memory_space<vmem>>, vector<2x1x128xf32>,
    %cst_38 = arith.constant 0.000000e+00 : f32
    %33 = vector.broadcast %cst_38 : f32 to vector<2x1x128xf32>
    %c0_39 = arith.constant 0 : index
    %c17_40 = arith.constant 17 : index
    %c0_41 = arith.constant 0 : index
    %34 = vector.load %arg8[%c0_39, %c17_40, %c0_41] : memref<2x18x128xf32, #tpu.memory_space<vmem>>, vector<2x1x128xf32>
    tpu.vector_store %arg8[%c0_39, %c17_40, %c0_41], %33 {strides = array<i32>} : memref<2x18x128xf32, #tpu.memory_space<vmem>>, vector<2x1x128xf32>,
    %c0_42 = arith.constant 0 : index
    %c1_43 = arith.constant 1 : index
    %c0_44 = arith.constant 0 : index
    %35 = vector.load %arg8[%c0_42, %c1_43, %c0_44] : memref<2x18x128xf32, #tpu.memory_space<vmem>>, vector<2x16x128xf32>
    tpu.vector_store %arg8[%c0_42, %c1_43, %c0_44], %30 {strides = array<i32>} : memref<2x18x128xf32, #tpu.memory_space<vmem>>, vector<2x16x128xf32>,
    %cst_45 = arith.constant 0.000000e+00 : f32
    %36 = vector.broadcast %cst_45 : f32 to vector<16x128xf32>
    %c0_46 = arith.constant 0 : index
    %c0_47 = arith.constant 0 : index
    %c0_48 = arith.constant 0 : index
    %37 = tpu.strided_load %arg8[%c0_46, %c0_47, %c0_48] {strides = array<i32: 1, 2, 1>} : memref<2x18x128xf32, #tpu.memory_space<vmem>>, vector<2x8x128xf32>
    %38 = vector.shape_cast %37 : vector<2x8x128xf32> to vector<16x128xf32>
    %c0_49 = arith.constant 0 : index
    %c0_50 = arith.constant 0 : index
    %c0_51 = arith.constant 0 : index
    %39 = vector.load %arg4[%c0_49, %c0_50, %c0_51] : memref<3x128x128xf32, #tpu.memory_space<vmem>>, vector<1x128x128xf32>
    %40 = vector.shape_cast %39 : vector<1x128x128xf32> to vector<128x128xf32>
    %cst_52 = arith.constant dense<0.000000e+00> : vector<16x128xf32>
    %41 = tpu.matmul %38, %40, %cst_52 {dimension_numbers = #tpu.dot_dimension_numbers<[1], [0], [0], [1], [0, 0, 1, 1], [], []>} : vector<16x128xf32>, vector<128x128xf32>, vector<16x128xf32> -> vector<16x128xf32>
    %42 = arith.addf %36, %41 : vector<16x128xf32>
    %c0_53 = arith.constant 0 : index
    %c1_54 = arith.constant 1 : index
    %c0_55 = arith.constant 0 : index
    %43 = tpu.strided_load %arg8[%c0_53, %c1_54, %c0_55] {strides = array<i32: 1, 2, 1>} : memref<2x18x128xf32, #tpu.memory_space<vmem>>, vector<2x8x128xf32>
    %44 = vector.shape_cast %43 : vector<2x8x128xf32> to vector<16x128xf32>
    %c1_56 = arith.constant 1 : index
    %c0_57 = arith.constant 0 : index
    %c0_58 = arith.constant 0 : index
    %45 = vector.load %arg4[%c1_56, %c0_57, %c0_58] : memref<3x128x128xf32, #tpu.memory_space<vmem>>, vector<1x128x128xf32>
    %46 = vector.shape_cast %45 : vector<1x128x128xf32> to vector<128x128xf32>
    %cst_59 = arith.constant dense<0.000000e+00> : vector<16x128xf32>
    %47 = tpu.matmul %44, %46, %cst_59 {dimension_numbers = #tpu.dot_dimension_numbers<[1], [0], [0], [1], [0, 0, 1, 1], [], []>} : vector<16x128xf32>, vector<128x128xf32>, vector<16x128xf32> -> vector<16x128xf32>
    %48 = arith.addf %42, %47 : vector<16x128xf32>
    %c0_60 = arith.constant 0 : index
    %c2_61 = arith.constant 2 : index
    %c0_62 = arith.constant 0 : index
    %49 = tpu.strided_load %arg8[%c0_60, %c2_61, %c0_62] {strides = array<i32: 1, 2, 1>} : memref<2x18x128xf32, #tpu.memory_space<vmem>>, vector<2x8x128xf32>
    %50 = vector.shape_cast %49 : vector<2x8x128xf32> to vector<16x128xf32>
    %c2_63 = arith.constant 2 : index
    %c0_64 = arith.constant 0 : index
    %c0_65 = arith.constant 0 : index
    %51 = vector.load %arg4[%c2_63, %c0_64, %c0_65] : memref<3x128x128xf32, #tpu.memory_space<vmem>>, vector<1x128x128xf32>
    %52 = vector.shape_cast %51 : vector<1x128x128xf32> to vector<128x128xf32>
    %cst_66 = arith.constant dense<0.000000e+00> : vector<16x128xf32>
    %53 = tpu.matmul %50, %52, %cst_66 {dimension_numbers = #tpu.dot_dimension_numbers<[1], [0], [0], [1], [0, 0, 1, 1], [], []>} : vector<16x128xf32>, vector<128x128xf32>, vector<16x128xf32> -> vector<16x128xf32>
    %54 = arith.addf %48, %53 : vector<16x128xf32>
    %cst_67 = arith.constant 0.000000e+00 : f32
    %55 = vector.broadcast %cst_67 : f32 to vector<16x128xf32>
    %c0_68 = arith.constant 0 : index
    %c1_69 = arith.constant 1 : index
    %c0_70 = arith.constant 0 : index
    %56 = tpu.strided_load %arg8[%c0_68, %c1_69, %c0_70] {strides = array<i32: 1, 2, 1>} : memref<2x18x128xf32, #tpu.memory_space<vmem>>, vector<2x8x128xf32>
    %57 = vector.shape_cast %56 : vector<2x8x128xf32> to vector<16x128xf32>
    %c0_71 = arith.constant 0 : index
    %c0_72 = arith.constant 0 : index
    %c0_73 = arith.constant 0 : index
    %58 = vector.load %arg4[%c0_71, %c0_72, %c0_73] : memref<3x128x128xf32, #tpu.memory_space<vmem>>, vector<1x128x128xf32>
    %59 = vector.shape_cast %58 : vector<1x128x128xf32> to vector<128x128xf32>
    %cst_74 = arith.constant dense<0.000000e+00> : vector<16x128xf32>
    %60 = tpu.matmul %57, %59, %cst_74 {dimension_numbers = #tpu.dot_dimension_numbers<[1], [0], [0], [1], [0, 0, 1, 1], [], []>} : vector<16x128xf32>, vector<128x128xf32>, vector<16x128xf32> -> vector<16x128xf32>
    %61 = arith.addf %55, %60 : vector<16x128xf32>
    %c0_75 = arith.constant 0 : index
    %c2_76 = arith.constant 2 : index
    %c0_77 = arith.constant 0 : index
    %62 = tpu.strided_load %arg8[%c0_75, %c2_76, %c0_77] {strides = array<i32: 1, 2, 1>} : memref<2x18x128xf32, #tpu.memory_space<vmem>>, vector<2x8x128xf32>
    %63 = vector.shape_cast %62 : vector<2x8x128xf32> to vector<16x128xf32>
    %c1_78 = arith.constant 1 : index
    %c0_79 = arith.constant 0 : index
    %c0_80 = arith.constant 0 : index
    %64 = vector.load %arg4[%c1_78, %c0_79, %c0_80] : memref<3x128x128xf32, #tpu.memory_space<vmem>>, vector<1x128x128xf32>
    %65 = vector.shape_cast %64 : vector<1x128x128xf32> to vector<128x128xf32>
    %cst_81 = arith.constant dense<0.000000e+00> : vector<16x128xf32>
    %66 = tpu.matmul %63, %65, %cst_81 {dimension_numbers = #tpu.dot_dimension_numbers<[1], [0], [0], [1], [0, 0, 1, 1], [], []>} : vector<16x128xf32>, vector<128x128xf32>, vector<16x128xf32> -> vector<16x128xf32>
    %67 = arith.addf %61, %66 : vector<16x128xf32>
    %c0_82 = arith.constant 0 : index
    %c3 = arith.constant 3 : index
    %c0_83 = arith.constant 0 : index
    %68 = tpu.strided_load %arg8[%c0_82, %c3, %c0_83] {strides = array<i32: 1, 2, 1>} : memref<2x18x128xf32, #tpu.memory_space<vmem>>, vector<2x8x128xf32>
    %69 = vector.shape_cast %68 : vector<2x8x128xf32> to vector<16x128xf32>
    %c2_84 = arith.constant 2 : index
    %c0_85 = arith.constant 0 : index
    %c0_86 = arith.constant 0 : index
    %70 = vector.load %arg4[%c2_84, %c0_85, %c0_86] : memref<3x128x128xf32, #tpu.memory_space<vmem>>, vector<1x128x128xf32>
    %71 = vector.shape_cast %70 : vector<1x128x128xf32> to vector<128x128xf32>
    %cst_87 = arith.constant dense<0.000000e+00> : vector<16x128xf32>
    %72 = tpu.matmul %69, %71, %cst_87 {dimension_numbers = #tpu.dot_dimension_numbers<[1], [0], [0], [1], [0, 0, 1, 1], [], []>} : vector<16x128xf32>, vector<128x128xf32>, vector<16x128xf32> -> vector<16x128xf32>
    %73 = arith.addf %67, %72 : vector<16x128xf32>
    %74 = arith.maximumf %54, %73 : vector<16x128xf32>
    %c0_88 = arith.constant 0 : index
    %c0_89 = arith.constant 0 : index
    %75 = vector.load %arg5[%c0_88, %c0_89] : memref<1x128xf32, #tpu.memory_space<vmem>>, vector<1x128xf32>
    %76 = vector.broadcast %75 : vector<1x128xf32> to vector<16x128xf32>
    %77 = arith.addf %74, %76 : vector<16x128xf32>
    %78 = vector.extract_strided_slice %77 {offsets = [0, 0], sizes = [16, 8], strides = [1, 1]} : vector<16x128xf32> to vector<16x8xf32>
    %79 = vector.extract_strided_slice %77 {offsets = [0, 8], sizes = [16, 8], strides = [1, 1]} : vector<16x128xf32> to vector<16x8xf32>
    %80 = arith.maximumf %78, %79 : vector<16x8xf32>
    %81 = vector.extract_strided_slice %77 {offsets = [0, 16], sizes = [16, 8], strides = [1, 1]} : vector<16x128xf32> to vector<16x8xf32>
    %82 = vector.extract_strided_slice %77 {offsets = [0, 24], sizes = [16, 8], strides = [1, 1]} : vector<16x128xf32> to vector<16x8xf32>
    %83 = arith.maximumf %81, %82 : vector<16x8xf32>
    %84 = vector.extract_strided_slice %77 {offsets = [0, 32], sizes = [16, 8], strides = [1, 1]} : vector<16x128xf32> to vector<16x8xf32>
    %85 = vector.extract_strided_slice %77 {offsets = [0, 40], sizes = [16, 8], strides = [1, 1]} : vector<16x128xf32> to vector<16x8xf32>
    %86 = arith.maximumf %84, %85 : vector<16x8xf32>
    %87 = vector.extract_strided_slice %77 {offsets = [0, 48], sizes = [16, 8], strides = [1, 1]} : vector<16x128xf32> to vector<16x8xf32>
    %88 = vector.extract_strided_slice %77 {offsets = [0, 56], sizes = [16, 8], strides = [1, 1]} : vector<16x128xf32> to vector<16x8xf32>
    %89 = arith.maximumf %87, %88 : vector<16x8xf32>
    %90 = vector.extract_strided_slice %77 {offsets = [0, 64], sizes = [16, 8], strides = [1, 1]} : vector<16x128xf32> to vector<16x8xf32>
    %91 = vector.extract_strided_slice %77 {offsets = [0, 72], sizes = [16, 8], strides = [1, 1]} : vector<16x128xf32> to vector<16x8xf32>
    %92 = arith.maximumf %90, %91 : vector<16x8xf32>
    %93 = vector.extract_strided_slice %77 {offsets = [0, 80], sizes = [16, 8], strides = [1, 1]} : vector<16x128xf32> to vector<16x8xf32>
    %94 = vector.extract_strided_slice %77 {offsets = [0, 88], sizes = [16, 8], strides = [1, 1]} : vector<16x128xf32> to vector<16x8xf32>
    %95 = arith.maximumf %93, %94 : vector<16x8xf32>
    %96 = vector.extract_strided_slice %77 {offsets = [0, 96], sizes = [16, 8], strides = [1, 1]} : vector<16x128xf32> to vector<16x8xf32>
    %97 = vector.extract_strided_slice %77 {offsets = [0, 104], sizes = [16, 8], strides = [1, 1]} : vector<16x128xf32> to vector<16x8xf32>
    %98 = arith.maximumf %96, %97 : vector<16x8xf32>
    %99 = vector.extract_strided_slice %77 {offsets = [0, 112], sizes = [16, 8], strides = [1, 1]} : vector<16x128xf32> to vector<16x8xf32>
    %100 = vector.extract_strided_slice %77 {offsets = [0, 120], sizes = [16, 8], strides = [1, 1]} : vector<16x128xf32> to vector<16x8xf32>
    %101 = arith.maximumf %99, %100 : vector<16x8xf32>
    %102 = tpu.concatenate %80, %83, %86, %89, %92, %95, %98, %101 in 1 : vector<16x8xf32>, vector<16x8xf32>, vector<16x8xf32>, vector<16x8xf32>, vector<16x8xf32>, vector<16x8xf32>, vector<16x8xf32>, vector<16x8xf32> -> vector<16x64xf32>
    %103 = vector.shape_cast %102 : vector<16x64xf32> to vector<2x8x64xf32>
    %c0_90 = arith.constant 0 : index
    %c0_91 = arith.constant 0 : index
    %c0_92 = arith.constant 0 : index
    %104 = vector.load %arg6[%c0_90, %c0_91, %c0_92] : memref<2x8x64xf32, #tpu.memory_space<vmem>>, vector<2x8x64xf32>
    tpu.vector_store %arg6[%c0_90, %c0_91, %c0_92], %103 {strides = array<i32>} : memref<2x8x64xf32, #tpu.memory_space<vmem>>, vector<2x8x64xf32>,
    return
  }
  func.func @transform_0(%arg0: i32) -> (i32, i32, i32) {
    %c0_i32 = arith.constant 0 : i32
    %c0_i32_0 = arith.constant 0 : i32
    %c0_i32_1 = arith.constant 0 : i32
    return %arg0, %c0_i32, %c0_i32_0 : i32, i32, i32
  }
  func.func @transform_1(%arg0: i32) -> (i32, i32, i32) {
    %c0_i32 = arith.constant 0 : i32
    %c0_i32_0 = arith.constant 0 : i32
    %c0_i32_1 = arith.constant 0 : i32
    %c0_i32_2 = arith.constant 0 : i32
    return %c0_i32, %c0_i32_0, %c0_i32_1 : i32, i32, i32
  }
  func.func @transform_2(%arg0: i32) -> (i32, i32) {
    %c0_i32 = arith.constant 0 : i32
    %c0_i32_0 = arith.constant 0 : i32
    %c0_i32_1 = arith.constant 0 : i32
    return %c0_i32, %c0_i32_0 : i32, i32
  }
  func.func @transform_3(%arg0: i32) -> (i32, i32, i32) {
    %c0_i32 = arith.constant 0 : i32
    %c0_i32_0 = arith.constant 0 : i32
    %c0_i32_1 = arith.constant 0 : i32
    %c0_i32_2 = arith.constant 0 : i32
    return %c0_i32, %c0_i32_0, %c0_i32_1 : i32, i32, i32
  }
  func.func @transform_4(%arg0: i32) -> (i32, i32) {
    %c0_i32 = arith.constant 0 : i32
    %c0_i32_0 = arith.constant 0 : i32
    %c0_i32_1 = arith.constant 0 : i32
    return %c0_i32, %c0_i32_0 : i32, i32
  }
  func.func @transform_5(%arg0: i32) -> (i32, i32, i32) {
    %c0_i32 = arith.constant 0 : i32
    %c0_i32_0 = arith.constant 0 : i32
    %c0_i32_1 = arith.constant 0 : i32
    return %arg0, %c0_i32, %c0_i32_0 : i32, i32, i32
  }
}

</mosaic_0001>

<llo_original>
// kernel: tpu_custom_call.1
$region0: #{tpu_custom_call.1}
  #allocation0 [shape = 'u32[]', space=smem, size = 0x4, offset = 0x4, fixed_abs, tag = 'smem constant byte address 0x4 - core index']
  #allocation1 [shape = 'u32[72,128]{1,0:T(1,128)}', space=vmem, size = 0x9000, scoped, tag = 'internal scratch']
  #allocation2 [shape = 'f32[2,18,64]{2,1,0:T(8,128)}', space=vmem, size = 0x6000, scoped, tag = 'scratch operand']
  #allocation3 [shape = 'f32[2,18,128]{2,1,0:T(8,128)}', space=vmem, size = 0x6000, scoped, tag = 'scratch operand']
  %s0 = inlined_call_operand.hbm [shape: f32[2,16,64], index: 0, kind: input, shape index: {}]
  %s1 = inlined_call_operand.hbm [shape: f32[3,64,128], index: 1, kind: input, shape index: {}]
  %s2 = inlined_call_operand.vmem [shape: f32[1,128], index: 2, kind: input, shape index: {}]
  %s3 = inlined_call_operand.hbm [shape: f32[3,128,128], index: 3, kind: input, shape index: {}]
  %s4 = inlined_call_operand.vmem [shape: f32[1,128], index: 4, kind: input, shape index: {}]
  %s5 = inlined_call_operand.hbm [shape: f32[2,8,64], index: 5, kind: output, shape index: {}]
  %s6 = sld [smem:[#allocation0]]
  $region42: #{tpu_custom_call.1} parent=0
    _
  %s8 = ssub.s32 1, %s6
  %s9 = scalar_select 0, %s8, %s6
  $region1: #{tpu_custom_call.1} parent=0
    #allocation4 [shape = 'u8[16384]{0}', space=vmem, size = 0x4000, scoped, tag = 'input window, operand 0, single buffered']
    #allocation5 [shape = 's32[1]{0}', space=sflag, size = 0x4, scoped, tag = 'scoped memory for tpu_custom_call.1']
    #allocation6 [shape = 's32[1]{0}', space=sflag, size = 0x4, scoped, tag = 'scoped memory for tpu_custom_call.1']
    #allocation7 [shape = 'u8[98304]{0}', space=vmem, size = 0x18000, scoped, tag = 'input window, operand 1, single buffered']
    #allocation8 [shape = 's32[1]{0}', space=sflag, size = 0x4, scoped, tag = 'scoped memory for tpu_custom_call.1']
    #allocation9 [shape = 'u8[196608]{0}', space=vmem, size = 0x30000, scoped, tag = 'input window, operand 3, single buffered']
    #allocation10 [shape = 'u8[8192]{0}', space=vmem, size = 0x2000, scoped, tag = 'output window, operand 0, single buffered']
    %10 = vsyncpa [#allocation5], 0
    %11 = vsyncpa [#allocation8], 0
    %12 = vsyncpa [#allocation6], 0
    // Predicated region
    $region2: #{tpu_custom_call.1} parent=1 // pred_check
      _
    $region3: #{tpu_custom_call.1} parent=1 // pred_check_branch
      %14 = sbr.rel (0) target = $region5
    $region4: #{tpu_custom_call.1} parent=1 // pred_region
      %16 = vsyncadd [#allocation5], 0
      %s17 = sshll.u32 %s0, 4
      %s18 = int_to_ptr.hbm [resolvable:$true] %s17
      %s19 = sshll.u32 [#allocation4], 4
      %s20 = int_to_ptr.vmem [resolvable:$true] %s19
      %25 = dma.hbm_to_vmem [thread:$0]  %s18, 512, %s20, [#allocation5], 128, 128, 8
    $region5: #{tpu_custom_call.1} parent=1 // pred_fallthru
      _
    // Predicated region
    $region6: #{tpu_custom_call.1} parent=1 // pred_check
      _
    $region7: #{tpu_custom_call.1} parent=1 // pred_check_branch
      %27 = sbr.rel (0) target = $region9
    $region8: #{tpu_custom_call.1} parent=1 // pred_region
      %29 = vsyncadd [#allocation8], 0
      %s30 = sshll.u32 %s1, 4
      %s31 = int_to_ptr.hbm [resolvable:$true] %s30
      %s32 = sshll.u32 [#allocation7], 4
      %s33 = int_to_ptr.vmem [resolvable:$true] %s32
      %38 = dma.hbm_to_vmem [thread:$0]  %s31, 3072, %s33, [#allocation8], 128, 128, 8
    $region9: #{tpu_custom_call.1} parent=1 // pred_fallthru
      _
    // Predicated region
    $region10: #{tpu_custom_call.1} parent=1 // pred_check
      _
    $region11: #{tpu_custom_call.1} parent=1 // pred_check_branch
      %40 = sbr.rel (0) target = $region13
    $region12: #{tpu_custom_call.1} parent=1 // pred_region
      _
    $region13: #{tpu_custom_call.1} parent=1 // pred_fallthru
      _
    // Predicated region
    $region14: #{tpu_custom_call.1} parent=1 // pred_check
      _
    $region15: #{tpu_custom_call.1} parent=1 // pred_check_branch
      %42 = sbr.rel (0) target = $region17
    $region16: #{tpu_custom_call.1} parent=1 // pred_region
      %44 = vsyncadd [#allocation8], 0
      %s45 = sshll.u32 %s3, 4
      %s46 = int_to_ptr.hbm [resolvable:$true] %s45
      %s47 = sshll.u32 [#allocation9], 4
      %s48 = int_to_ptr.vmem [resolvable:$true] %s47
      %53 = dma.hbm_to_vmem [thread:$0]  %s46, 6144, %s48, [#allocation8], 128, 128, 8
    $region17: #{tpu_custom_call.1} parent=1 // pred_fallthru
      _
    // Predicated region
    $region18: #{tpu_custom_call.1} parent=1 // pred_check
      _
    $region19: #{tpu_custom_call.1} parent=1 // pred_check_branch
      %55 = sbr.rel (0) target = $region21
    $region20: #{tpu_custom_call.1} parent=1 // pred_region
      _
    $region21: #{tpu_custom_call.1} parent=1 // pred_fallthru
      _
    // Predicated region
    $region22: #{tpu_custom_call.1} parent=1 // pred_check
      _
    $region23: #{tpu_custom_call.1} parent=1 // pred_check_branch
      %57 = sbr.rel (0) target = $region25
    $region24: #{tpu_custom_call.1} parent=1 // pred_region
      %59 = dma.done [#allocation5], 512
    $region25: #{tpu_custom_call.1} parent=1 // pred_fallthru
      _
    // Predicated region
    $region26: #{tpu_custom_call.1} parent=1 // pred_check
      _
    $region27: #{tpu_custom_call.1} parent=1 // pred_check_branch
      %61 = sbr.rel (0) target = $region29
    $region28: #{tpu_custom_call.1} parent=1 // pred_region
      %63 = dma.done [#allocation8], 3072
    $region29: #{tpu_custom_call.1} parent=1 // pred_fallthru
      _
    // Predicated region
    $region30: #{tpu_custom_call.1} parent=1 // pred_check
      _
    $region31: #{tpu_custom_call.1} parent=1 // pred_check_branch
      %65 = sbr.rel (0) target = $region33
    $region32: #{tpu_custom_call.1} parent=1 // pred_region
      %67 = dma.done [#allocation8], 6144
    $region33: #{tpu_custom_call.1} parent=1 // pred_fallthru
      _
    %v68 = vld [vmem:[#allocation4] sm:$0xff]
    %v69 = vld [vmem:[#allocation4 + $0x8] sm:$0xff]
    %v70 = vld [vmem:[#allocation4 + $0x10] sm:$0xff]
    %v71 = vld [vmem:[#allocation4 + $0x18] sm:$0xff]
    %vm72 = vcmask 516096
    %73 = vst.msk [vmem:[#allocation2] sm:$0x1] %vm72, 0.0
    %74 = vst.msk [vmem:[#allocation2 + $0x18] sm:$0x1] %vm72, 0.0
    %75 = vst.msk [vmem:[#allocation2 + $0x11] sm:$0x1] %vm72, 0.0
    %76 = vst.msk [vmem:[#allocation2 + $0x29] sm:$0x1] %vm72, 0.0
    %vm77 = vcmask 523264
    %78 = vst.msk [vmem:[#allocation2 + $0x1] sm:$0xff] %vm77, %v68
    %79 = vst.msk [vmem:[#allocation2 + $0x9] sm:$0xff] %vm77, %v69
    %80 = vst.msk [vmem:[#allocation2 + $0x19] sm:$0xff] %vm77, %v70
    %81 = vst.msk [vmem:[#allocation2 + $0x21] sm:$0xff] %vm77, %v71
    %v82 = vld [vmem:[#allocation2] sm:$0xff]
    %v83 = vld [vmem:[#allocation2 + $0x8] sm:$0xff]
    %v84 = vld [vmem:[#allocation2 + $0x18] sm:$0xff]
    %v85 = vld [vmem:[#allocation2 + $0x20] sm:$0xff]
    %v86 = vld [vmem:[#allocation7] sm:$0xff]
    %v87 = vld [vmem:[#allocation7 + $0x8] sm:$0xff]
    %v88 = vld [vmem:[#allocation7 + $0x10] sm:$0xff]
    %v89 = vld [vmem:[#allocation7 + $0x18] sm:$0xff]
    %v90 = vld [vmem:[#allocation7 + $0x20] sm:$0xff]
    %v91 = vld [vmem:[#allocation7 + $0x28] sm:$0xff]
    %v92 = vld [vmem:[#allocation7 + $0x30] sm:$0xff]
    %v93 = vld [vmem:[#allocation7 + $0x38] sm:$0xff]
    %v94 = vld [vmem:[#allocation2 + $0x1] sm:$0xff]
    %v95 = vld [vmem:[#allocation2 + $0x9] sm:$0xff]
    %v96 = vld [vmem:[#allocation2 + $0x19] sm:$0xff]
    %v97 = vld [vmem:[#allocation2 + $0x21] sm:$0xff]
    %s98 = scalar_lea.vmem [#allocation7], 64
    %v99 = vld [vmem:[%s98] sm:$0xff]
    %v100 = vld [vmem:[%s98 + $0x8] sm:$0xff]
    %v101 = vld [vmem:[%s98 + $0x10] sm:$0xff]
    %v102 = vld [vmem:[%s98 + $0x18] sm:$0xff]
    %v103 = vld [vmem:[%s98 + $0x20] sm:$0xff]
    %v104 = vld [vmem:[%s98 + $0x28] sm:$0xff]
    %v105 = vld [vmem:[%s98 + $0x30] sm:$0xff]
    %v106 = vld [vmem:[%s98 + $0x38] sm:$0xff]
    %v108 = vsel %vm77, %v94, 0
    %v111 = vsel %vm77, %v95, 0
    %v114 = vsel %vm77, %v96, 0
    %v117 = vsel %vm77, %v97, 0
    %119 = vmatpush.msra.mxu0 0.0
    %120 = vmatpush.msra.mxu0 0.0
    %121 = vmatpush.msra.mxu0 0.0
    %122 = vmatpush.msra.mxu0 0.0
    %123 = vmatpush.msra.mxu0 0.0
    %124 = vmatpush.msra.mxu0 0.0
    %125 = vmatpush.msra.mxu0 0.0
    %126 = vmatpush.msra.mxu0 0.0
    %127 = vmatpush.msra.mxu0 %v106
    %128 = vmatpush.msra.mxu0 %v105
    %129 = vmatpush.msra.mxu0 %v104
    %130 = vmatpush.msra.mxu0 %v103
    %131 = vmatpush.msra.mxu0 %v102
    %132 = vmatpush.msra.mxu0 %v101
    %133 = vmatpush.msra.mxu0 %v100
    %134 = vmatpush.msra.mxu0 %v99
    %135 = vmatmul.f32.gmra.mxu0 %v108
    %v136 = vpop.f32.mrf.mxu0
    %v137 = vadd.f32 0.0, %v136
    %138 = vmatmul.f32.gmra.mxu0 %v111
    %v139 = vpop.f32.mrf.mxu0
    %v140 = vadd.f32 0.0, %v139
    %141 = vmatmul.f32.gmra.mxu0 %v114
    %v142 = vpop.f32.mrf.mxu0
    %v143 = vadd.f32 0.0, %v142
    %144 = vmatmul.f32.gmra.mxu0 %v117
    %v145 = vpop.f32.mrf.mxu0
    %v146 = vadd.f32 0.0, %v145
    %147 = vdwg.mxu0
    %v149 = vsel %vm77, %v82, 0
    %v152 = vsel %vm77, %v83, 0
    %v155 = vsel %vm77, %v84, 0
    %v158 = vsel %vm77, %v85, 0
    %160 = vmatpush.msra.mxu0 0.0
    %161 = vmatpush.msra.mxu0 0.0
    %162 = vmatpush.msra.mxu0 0.0
    %163 = vmatpush.msra.mxu0 0.0
    %164 = vmatpush.msra.mxu0 0.0
    %165 = vmatpush.msra.mxu0 0.0
    %166 = vmatpush.msra.mxu0 0.0
    %167 = vmatpush.msra.mxu0 0.0
    %168 = vmatpush.msra.mxu0 %v93
    %169 = vmatpush.msra.mxu0 %v92
    %170 = vmatpush.msra.mxu0 %v91
    %171 = vmatpush.msra.mxu0 %v90
    %172 = vmatpush.msra.mxu0 %v89
    %173 = vmatpush.msra.mxu0 %v88
    %174 = vmatpush.msra.mxu0 %v87
    %175 = vmatpush.msra.mxu0 %v86
    %176 = vmatmul.f32.gmra.mxu0 %v149
    %v177 = vpop.f32.mrf.mxu0
    %v178 = vadd.f32 %v137, %v177
    %179 = vmatmul.f32.gmra.mxu0 %v152
    %v180 = vpop.f32.mrf.mxu0
    %v181 = vadd.f32 %v140, %v180
    %182 = vmatmul.f32.gmra.mxu0 %v155
    %v183 = vpop.f32.mrf.mxu0
    %v184 = vadd.f32 %v143, %v183
    %185 = vmatmul.f32.gmra.mxu0 %v158
    %v186 = vpop.f32.mrf.mxu0
    %v187 = vadd.f32 %v146, %v186
    %188 = vdwg.mxu0
    %v189 = vld [vmem:[#allocation2 + $0x2] sm:$0xff]
    %v190 = vld [vmem:[#allocation2 + $0xa] sm:$0xff]
    %v191 = vld [vmem:[#allocation2 + $0x1a] sm:$0xff]
    %v192 = vld [vmem:[#allocation2 + $0x22] sm:$0xff]
    %s193 = scalar_lea.vmem [#allocation7], 128
    %v194 = vld [vmem:[%s193] sm:$0xff]
    %v195 = vld [vmem:[%s193 + $0x8] sm:$0xff]
    %v196 = vld [vmem:[%s193 + $0x10] sm:$0xff]
    %v197 = vld [vmem:[%s193 + $0x18] sm:$0xff]
    %v198 = vld [vmem:[%s193 + $0x20] sm:$0xff]
    %v199 = vld [vmem:[%s193 + $0x28] sm:$0xff]
    %v200 = vld [vmem:[%s193 + $0x30] sm:$0xff]
    %v201 = vld [vmem:[%s193 + $0x38] sm:$0xff]
    %v203 = vsel %vm77, %v189, 0
    %v206 = vsel %vm77, %v190, 0
    %v209 = vsel %vm77, %v191, 0
    %v212 = vsel %vm77, %v192, 0
    %214 = vmatpush.msra.mxu0 0.0
    %215 = vmatpush.msra.mxu0 0.0
    %216 = vmatpush.msra.mxu0 0.0
    %217 = vmatpush.msra.mxu0 0.0
    %218 = vmatpush.msra.mxu0 0.0
    %219 = vmatpush.msra.mxu0 0.0
    %220 = vmatpush.msra.mxu0 0.0
    %221 = vmatpush.msra.mxu0 0.0
    %222 = vmatpush.msra.mxu0 %v201
    %223 = vmatpush.msra.mxu0 %v200
    %224 = vmatpush.msra.mxu0 %v199
    %225 = vmatpush.msra.mxu0 %v198
    %226 = vmatpush.msra.mxu0 %v197
    %227 = vmatpush.msra.mxu0 %v196
    %228 = vmatpush.msra.mxu0 %v195
    %229 = vmatpush.msra.mxu0 %v194
    %230 = vmatmul.f32.gmra.mxu0 %v203
    %v231 = vpop.f32.mrf.mxu0
    %v232 = vadd.f32 0.0, %v231
    %233 = vmatmul.f32.gmra.mxu0 %v206
    %v234 = vpop.f32.mrf.mxu0
    %v235 = vadd.f32 0.0, %v234
    %236 = vmatmul.f32.gmra.mxu0 %v209
    %v237 = vpop.f32.mrf.mxu0
    %v238 = vadd.f32 0.0, %v237
    %239 = vmatmul.f32.gmra.mxu0 %v212
    %v240 = vpop.f32.mrf.mxu0
    %v241 = vadd.f32 0.0, %v240
    %242 = vdwg.mxu0
    %v243 = vadd.f32 %v178, %v232
    %v244 = vadd.f32 %v181, %v235
    %v245 = vadd.f32 %v184, %v238
    %v246 = vadd.f32 %v187, %v241
    %v247 = vld [vmem:[%s2] sm:$0x1]
    %v249 = vperm.slane %v247, 0
    %v251 = vadd.f32 %v243, %v249
    %v252 = vadd.f32 %v244, %v249
    %v253 = vadd.f32 %v245, %v249
    %v254 = vadd.f32 %v246, %v249
    %v255 = vmax.f32 %v251, 0.0
    %v256 = vmax.f32 %v252, 0.0
    %v257 = vmax.f32 %v253, 0.0
    %v258 = vmax.f32 %v254, 0.0
    %259 = vst [vmem:[#allocation3] sm:$0x1] 0.0
    %260 = vst [vmem:[#allocation3 + $0x18] sm:$0x1] 0.0
    %261 = vst [vmem:[#allocation3 + $0x11] sm:$0x1] 0.0
    %262 = vst [vmem:[#allocation3 + $0x29] sm:$0x1] 0.0
    %263 = vst [vmem:[#allocation3 + $0x1] sm:$0xff] %v255
    %264 = vst [vmem:[#allocation3 + $0x9] sm:$0xff] %v256
    %265 = vst [vmem:[#allocation3 + $0x19] sm:$0xff] %v257
    %266 = vst [vmem:[#allocation3 + $0x21] sm:$0xff] %v258
    %v267 = vld [vmem:[#allocation3] ss:$2 sm:$0xff]
    %s268 = scalar_lea.vmem [#allocation3], 24
    %v269 = vld [vmem:[%s268] ss:$2 sm:$0xff]
    %v270 = vld [vmem:[#allocation9] sm:$0xff]
    %v271 = vld [vmem:[#allocation9 + $0x8] sm:$0xff]
    %v272 = vld [vmem:[#allocation9 + $0x10] sm:$0xff]
    %v273 = vld [vmem:[#allocation9 + $0x18] sm:$0xff]
    %v274 = vld [vmem:[#allocation9 + $0x20] sm:$0xff]
    %v275 = vld [vmem:[#allocation9 + $0x28] sm:$0xff]
    %v276 = vld [vmem:[#allocation9 + $0x30] sm:$0xff]
    %v277 = vld [vmem:[#allocation9 + $0x38] sm:$0xff]
    %v278 = vld [vmem:[#allocation9 + $0x40] sm:$0xff]
    %v279 = vld [vmem:[#allocation9 + $0x48] sm:$0xff]
    %v280 = vld [vmem:[#allocation9 + $0x50] sm:$0xff]
    %v281 = vld [vmem:[#allocation9 + $0x58] sm:$0xff]
    %v282 = vld [vmem:[#allocation9 + $0x60] sm:$0xff]
    %v283 = vld [vmem:[#allocation9 + $0x68] sm:$0xff]
    %v284 = vld [vmem:[#allocation9 + $0x70] sm:$0xff]
    %v285 = vld [vmem:[#allocation9 + $0x78] sm:$0xff]
    %s286 = scalar_lea.vmem [#allocation3], 1
    %v287 = vld [vmem:[%s286] ss:$2 sm:$0xff]
    %s288 = scalar_lea.vmem [#allocation3], 25
    %v289 = vld [vmem:[%s288] ss:$2 sm:$0xff]
    %s290 = scalar_lea.vmem [#allocation9], 128
    %v291 = vld [vmem:[%s290] sm:$0xff]
    %v292 = vld [vmem:[%s290 + $0x8] sm:$0xff]
    %v293 = vld [vmem:[%s290 + $0x10] sm:$0xff]
    %v294 = vld [vmem:[%s290 + $0x18] sm:$0xff]
    %v295 = vld [vmem:[%s290 + $0x20] sm:$0xff]
    %v296 = vld [vmem:[%s290 + $0x28] sm:$0xff]
    %v297 = vld [vmem:[%s290 + $0x30] sm:$0xff]
    %v298 = vld [vmem:[%s290 + $0x38] sm:$0xff]
    %v299 = vld [vmem:[%s290 + $0x40] sm:$0xff]
    %v300 = vld [vmem:[%s290 + $0x48] sm:$0xff]
    %v301 = vld [vmem:[%s290 + $0x50] sm:$0xff]
    %v302 = vld [vmem:[%s290 + $0x58] sm:$0xff]
    %v303 = vld [vmem:[%s290 + $0x60] sm:$0xff]
    %v304 = vld [vmem:[%s290 + $0x68] sm:$0xff]
    %v305 = vld [vmem:[%s290 + $0x70] sm:$0xff]
    %v306 = vld [vmem:[%s290 + $0x78] sm:$0xff]
    %307 = vmatpush.msra.mxu0 %v306
    %308 = vmatpush.msra.mxu0 %v305
    %309 = vmatpush.msra.mxu0 %v304
    %310 = vmatpush.msra.mxu0 %v303
    %311 = vmatpush.msra.mxu0 %v302
    %312 = vmatpush.msra.mxu0 %v301
    %313 = vmatpush.msra.mxu0 %v300
    %314 = vmatpush.msra.mxu0 %v299
    %315 = vmatpush.msra.mxu0 %v298
    %316 = vmatpush.msra.mxu0 %v297
    %317 = vmatpush.msra.mxu0 %v296
    %318 = vmatpush.msra.mxu0 %v295
    %319 = vmatpush.msra.mxu0 %v294
    %320 = vmatpush.msra.mxu0 %v293
    %321 = vmatpush.msra.mxu0 %v292
    %322 = vmatpush.msra.mxu0 %v291
    %323 = vmatmul.f32.gmra.mxu0 %v287
    %v324 = vpop.f32.mrf.mxu0
    %v325 = vadd.f32 0.0, %v324
    %326 = vmatmul.f32.gmra.mxu0 %v289
    %v327 = vpop.f32.mrf.mxu0
    %v328 = vadd.f32 0.0, %v327
    %329 = vdwg.mxu0
    %330 = vmatpush.msra.mxu0 %v285
    %331 = vmatpush.msra.mxu0 %v284
    %332 = vmatpush.msra.mxu0 %v283
    %333 = vmatpush.msra.mxu0 %v282
    %334 = vmatpush.msra.mxu0 %v281
    %335 = vmatpush.msra.mxu0 %v280
    %336 = vmatpush.msra.mxu0 %v279
    %337 = vmatpush.msra.mxu0 %v278
    %338 = vmatpush.msra.mxu0 %v277
    %339 = vmatpush.msra.mxu0 %v276
    %340 = vmatpush.msra.mxu0 %v275
    %341 = vmatpush.msra.mxu0 %v274
    %342 = vmatpush.msra.mxu0 %v273
    %343 = vmatpush.msra.mxu0 %v272
    %344 = vmatpush.msra.mxu0 %v271
    %345 = vmatpush.msra.mxu0 %v270
    %346 = vmatmul.f32.gmra.mxu0 %v267
    %v347 = vpop.f32.mrf.mxu0
    %v348 = vadd.f32 %v325, %v347
    %349 = vmatmul.f32.gmra.mxu0 %v269
    %v350 = vpop.f32.mrf.mxu0
    %v351 = vadd.f32 %v328, %v350
    %352 = vdwg.mxu0
    %s353 = scalar_lea.vmem [#allocation3], 2
    %v354 = vld [vmem:[%s353] ss:$2 sm:$0xff]
    %s355 = scalar_lea.vmem [#allocation3], 26
    %v356 = vld [vmem:[%s355] ss:$2 sm:$0xff]
    %s357 = scalar_lea.vmem [#allocation9], 256
    %v358 = vld [vmem:[%s357] sm:$0xff]
    %v359 = vld [vmem:[%s357 + $0x8] sm:$0xff]
    %v360 = vld [vmem:[%s357 + $0x10] sm:$0xff]
    %v361 = vld [vmem:[%s357 + $0x18] sm:$0xff]
    %v362 = vld [vmem:[%s357 + $0x20] sm:$0xff]
    %v363 = vld [vmem:[%s357 + $0x28] sm:$0xff]
    %v364 = vld [vmem:[%s357 + $0x30] sm:$0xff]
    %v365 = vld [vmem:[%s357 + $0x38] sm:$0xff]
    %v366 = vld [vmem:[%s357 + $0x40] sm:$0xff]
    %v367 = vld [vmem:[%s357 + $0x48] sm:$0xff]
    %v368 = vld [vmem:[%s357 + $0x50] sm:$0xff]
    %v369 = vld [vmem:[%s357 + $0x58] sm:$0xff]
    %v370 = vld [vmem:[%s357 + $0x60] sm:$0xff]
    %v371 = vld [vmem:[%s357 + $0x68] sm:$0xff]
    %v372 = vld [vmem:[%s357 + $0x70] sm:$0xff]
    %v373 = vld [vmem:[%s357 + $0x78] sm:$0xff]
    %374 = vmatpush.msra.mxu0 %v373
    %375 = vmatpush.msra.mxu0 %v372
    %376 = vmatpush.msra.mxu0 %v371
    %377 = vmatpush.msra.mxu0 %v370
    %378 = vmatpush.msra.mxu0 %v369
    %379 = vmatpush.msra.mxu0 %v368
    %380 = vmatpush.msra.mxu0 %v367
    %381 = vmatpush.msra.mxu0 %v366
    %382 = vmatpush.msra.mxu0 %v365
    %383 = vmatpush.msra.mxu0 %v364
    %384 = vmatpush.msra.mxu0 %v363
    %385 = vmatpush.msra.mxu0 %v362
    %386 = vmatpush.msra.mxu0 %v361
    %387 = vmatpush.msra.mxu0 %v360
    %388 = vmatpush.msra.mxu0 %v359
    %389 = vmatpush.msra.mxu0 %v358
    %390 = vmatmul.f32.gmra.mxu0 %v354
    %v391 = vpop.f32.mrf.mxu0
    %v392 = vadd.f32 0.0, %v391
    %393 = vmatmul.f32.gmra.mxu0 %v356
    %v394 = vpop.f32.mrf.mxu0
    %v395 = vadd.f32 0.0, %v394
    %396 = vdwg.mxu0
    %v397 = vadd.f32 %v348, %v392
    %v398 = vadd.f32 %v351, %v395
    %399 = vmatpush.msra.mxu0 %v306
    %400 = vmatpush.msra.mxu0 %v305
    %401 = vmatpush.msra.mxu0 %v304
    %402 = vmatpush.msra.mxu0 %v303
    %403 = vmatpush.msra.mxu0 %v302
    %404 = vmatpush.msra.mxu0 %v301
    %405 = vmatpush.msra.mxu0 %v300
    %406 = vmatpush.msra.mxu0 %v299
    %407 = vmatpush.msra.mxu0 %v298
    %408 = vmatpush.msra.mxu0 %v297
    %409 = vmatpush.msra.mxu0 %v296
    %410 = vmatpush.msra.mxu0 %v295
    %411 = vmatpush.msra.mxu0 %v294
    %412 = vmatpush.msra.mxu0 %v293
    %413 = vmatpush.msra.mxu0 %v292
    %414 = vmatpush.msra.mxu0 %v291
    %415 = vmatmul.f32.gmra.mxu0 %v354
    %v416 = vpop.f32.mrf.mxu0
    %v417 = vadd.f32 0.0, %v416
    %418 = vmatmul.f32.gmra.mxu0 %v356
    %v419 = vpop.f32.mrf.mxu0
    %v420 = vadd.f32 0.0, %v419
    %421 = vdwg.mxu0
    %422 = vmatpush.msra.mxu0 %v285
    %423 = vmatpush.msra.mxu0 %v284
    %424 = vmatpush.msra.mxu0 %v283
    %425 = vmatpush.msra.mxu0 %v282
    %426 = vmatpush.msra.mxu0 %v281
    %427 = vmatpush.msra.mxu0 %v280
    %428 = vmatpush.msra.mxu0 %v279
    %429 = vmatpush.msra.mxu0 %v278
    %430 = vmatpush.msra.mxu0 %v277
    %431 = vmatpush.msra.mxu0 %v276
    %432 = vmatpush.msra.mxu0 %v275
    %433 = vmatpush.msra.mxu0 %v274
    %434 = vmatpush.msra.mxu0 %v273
    %435 = vmatpush.msra.mxu0 %v272
    %436 = vmatpush.msra.mxu0 %v271
    %437 = vmatpush.msra.mxu0 %v270
    %438 = vmatmul.f32.gmra.mxu0 %v287
    %v439 = vpop.f32.mrf.mxu0
    %v440 = vadd.f32 %v417, %v439
    %441 = vmatmul.f32.gmra.mxu0 %v289
    %v442 = vpop.f32.mrf.mxu0
    %v443 = vadd.f32 %v420, %v442
    %444 = vdwg.mxu0
    %s445 = scalar_lea.vmem [#allocation3], 3
    %v446 = vld [vmem:[%s445] ss:$2 sm:$0xff]
    %s447 = scalar_lea.vmem [#allocation3], 27
    %v448 = vld [vmem:[%s447] ss:$2 sm:$0xff]
    %449 = vmatpush.msra.mxu0 %v373
    %450 = vmatpush.msra.mxu0 %v372
    %451 = vmatpush.msra.mxu0 %v371
    %452 = vmatpush.msra.mxu0 %v370
    %453 = vmatpush.msra.mxu0 %v369
    %454 = vmatpush.msra.mxu0 %v368
    %455 = vmatpush.msra.mxu0 %v367
    %456 = vmatpush.msra.mxu0 %v366
    %457 = vmatpush.msra.mxu0 %v365
    %458 = vmatpush.msra.mxu0 %v364
    %459 = vmatpush.msra.mxu0 %v363
    %460 = vmatpush.msra.mxu0 %v362
    %461 = vmatpush.msra.mxu0 %v361
    %462 = vmatpush.msra.mxu0 %v360
    %463 = vmatpush.msra.mxu0 %v359
    %464 = vmatpush.msra.mxu0 %v358
    %465 = vmatmul.f32.gmra.mxu0 %v446
    %v466 = vpop.f32.mrf.mxu0
    %v467 = vadd.f32 0.0, %v466
    %468 = vmatmul.f32.gmra.mxu0 %v448
    %v469 = vpop.f32.mrf.mxu0
    %v470 = vadd.f32 0.0, %v469
    %471 = vdwg.mxu0
    %v472 = vadd.f32 %v440, %v467
    %v473 = vadd.f32 %v443, %v470
    %v474 = vmax.f32 %v397, %v472
    %v475 = vmax.f32 %v398, %v473
    %v476 = vld [vmem:[%s4] sm:$0x1]
    %v478 = vperm.slane %v476, 0
    %v480 = vadd.f32 %v474, %v478
    %v481 = vadd.f32 %v475, %v478
    %484 = vrot.lane.b32.xlu0 %v480, 120
    %v485 = vpop.permute.xlu0 %484
    %486 = vrot.lane.b32.xlu0 %v481, 120
    %v487 = vpop.permute.xlu0 %486
    %v490 = vmax.f32 %v480, %v485
    %v491 = vmax.f32 %v481, %v487
    %494 = vrot.lane.b32.xlu0 %v490, 120
    %v495 = vpop.permute.xlu0 %494
    %496 = vrot.lane.b32.xlu0 %v491, 120
    %v497 = vpop.permute.xlu0 %496
    %500 = vrot.lane.b32.xlu0 %v490, 112
    %v501 = vpop.permute.xlu0 %500
    %502 = vrot.lane.b32.xlu0 %v491, 112
    %v503 = vpop.permute.xlu0 %502
    %506 = vrot.lane.b32.xlu0 %v490, 104
    %v507 = vpop.permute.xlu0 %506
    %508 = vrot.lane.b32.xlu0 %v491, 104
    %v509 = vpop.permute.xlu0 %508
    %512 = vrot.lane.b32.xlu0 %v490, 96
    %v513 = vpop.permute.xlu0 %512
    %514 = vrot.lane.b32.xlu0 %v491, 96
    %v515 = vpop.permute.xlu0 %514
    %518 = vrot.lane.b32.xlu0 %v490, 88
    %v519 = vpop.permute.xlu0 %518
    %520 = vrot.lane.b32.xlu0 %v491, 88
    %v521 = vpop.permute.xlu0 %520
    %524 = vrot.lane.b32.xlu0 %v490, 80
    %v525 = vpop.permute.xlu0 %524
    %526 = vrot.lane.b32.xlu0 %v491, 80
    %v527 = vpop.permute.xlu0 %526
    %530 = vrot.lane.b32.xlu0 %v490, 72
    %v531 = vpop.permute.xlu0 %530
    %532 = vrot.lane.b32.xlu0 %v491, 72
    %v533 = vpop.permute.xlu0 %532
    %vm536 = vcmask 64512
    %v537 = vsel %vm536, %v490, %v495
    %v538 = vsel %vm536, %v491, %v497
    %vm539 = vcmask 130048
    %v540 = vsel %vm539, %v537, %v501
    %v541 = vsel %vm539, %v538, %v503
    %vm542 = vcmask 195584
    %v543 = vsel %vm542, %v540, %v507
    %v544 = vsel %vm542, %v541, %v509
    %vm545 = vcmask 261120
    %v546 = vsel %vm545, %v543, %v513
    %v547 = vsel %vm545, %v544, %v515
    %vm548 = vcmask 326656
    %v549 = vsel %vm548, %v546, %v519
    %v550 = vsel %vm548, %v547, %v521
    %vm551 = vcmask 392192
    %v552 = vsel %vm551, %v549, %v525
    %v553 = vsel %vm551, %v550, %v527
    %vm554 = vcmask 457728
    %v555 = vsel %vm554, %v552, %v531
    %v556 = vsel %vm554, %v553, %v533
    %557 = vst.msk [vmem:[#allocation10] sm:$0xff] %vm77, %v555
    %558 = vst.msk [vmem:[#allocation10 + $0x8] sm:$0xff] %vm77, %v556
    // Predicated region
    $region34: #{tpu_custom_call.1} parent=1 // pred_check
      _
    $region35: #{tpu_custom_call.1} parent=1 // pred_check_branch
      %560 = sbr.rel (0) target = $region37
    $region36: #{tpu_custom_call.1} parent=1 // pred_region
      %562 = vsyncadd [#allocation6], 0
      %s563 = sshll.u32 [#allocation10], 4
      %s564 = int_to_ptr.vmem [resolvable:$true] %s563
      %s565 = sshll.u32 %s5, 4
      %s566 = int_to_ptr.hbm [resolvable:$true] %s565
      %571 = dma.vmem_to_hbm [thread:$0]  %s564, 256, %s566, [#allocation6], 128, 128, 8
    $region37: #{tpu_custom_call.1} parent=1 // pred_fallthru
      _
    // Predicated region
    $region38: #{tpu_custom_call.1} parent=1 // pred_check
      _
    $region39: #{tpu_custom_call.1} parent=1 // pred_check_branch
      %573 = sbr.rel (0) target = $region41
    $region40: #{tpu_custom_call.1} parent=1 // pred_region
      %575 = dma.done [#allocation6], 256
    $region41: #{tpu_custom_call.1} parent=1 // pred_fallthru
      _
    %576 = vsyncpa [#allocation5], 1
    %577 = vsyncpa [#allocation8], 1
    %578 = vsyncpa [#allocation6], 1

</llo_original>
